<compile_context>
chip_gen: v7x
topology: tpu7x:2x2x1
jax: 0.10.0
libtpu: 0.0.40
codegen_flags: <defaults>
</compile_context>

<pallas_src>
import functools

import jax
import jax.numpy as jnp
from jax.experimental import pallas as pl
from jax.experimental.pallas import tpu as pltpu

BN_EPS = 1e-5
_NEG_BIG = -1e30  # masks padded class lanes in the final log-softmax


# ---------------------------------------------------------------------------
# Fused kernel (built per static layer count / compute dtype)
# ---------------------------------------------------------------------------
def _make_fused_mlp_kernel(num_layers, compute_dtype):
    """Returns kernel(x_ref, w0, b0, ..., w{L-1}, b{L-1}, o_ref)."""
    is_f32 = jnp.dtype(compute_dtype) == jnp.dtype(jnp.float32)
    matmul_precision = jax.lax.Precision.HIGHEST if is_f32 else None

    def kernel(*refs):
        x_ref, o_ref = refs[0], refs[-1]
        wb = refs[1:-1]
        h = x_ref[...]                                  # already compute_dtype
        for layer in range(num_layers):
            w_ref, b_ref = wb[2 * layer], wb[2 * layer + 1]
            z = jnp.dot(h.astype(compute_dtype), w_ref[...],
                        preferred_element_type=jnp.float32,
                        precision=matmul_precision)
            z = z + b_ref[...]                          # [tile,F] + [1,F], f32
            if layer < num_layers - 1:
                h = jnp.maximum(z, 0.0)                 # relu (dropout = id), f32
            else:
                m = jnp.max(z, axis=-1, keepdims=True)
                s = jnp.sum(jnp.exp(z - m), axis=-1, keepdims=True)
                o_ref[...] = z - (m + jnp.log(s))       # log_softmax, f32

    return kernel


# ---------------------------------------------------------------------------
# Helpers
# ---------------------------------------------------------------------------
def _round_up(v, m):
    return ((v + m - 1) // m) * m


def _pad2d(a, rows, cols, value=0.0):
    return jnp.pad(a, ((0, rows - a.shape[0]), (0, cols - a.shape[1])),
                   constant_values=value)


def _vmem_budget_bytes():
    """~75% of per-core VMEM: ~96 MiB on v5e/v6e (128 MiB), ~48 MiB on v7x."""
    try:
        cap = int(pltpu.get_tpu_info().vmem_capacity_bytes)
    except Exception:                       # unknown build -> assume smallest
        cap = 64 << 20
    return max(32 << 20, (cap * 3) // 4)


def _vmem_estimate(tile, pdims, itemsize, w_bufs):
    """Footprint of the fused kernel for one batch tile (bytes)."""
    num_layers = len(pdims) - 1
    v = 2 * tile * pdims[0] * itemsize              # x, double-buffered
    v += 2 * tile * pdims[-1] * 4                   # log-probs out, double-buffered
    for i in range(num_layers):
        v += w_bufs * (pdims[i] * pdims[i + 1] * itemsize   # resident weights
                       + pdims[i + 1] * 4)                   # resident biases (f32)
    v += 3 * tile * max(pdims) * 4                  # f32 z / relu / exp temporaries
    v += tile * max(pdims) * itemsize               # bf16 cast of h feeding the MXU
    return v


def _choose_tile(n, tile_n):
    """Balanced batch tile: minimal padding, >=2 grid steps for large n so
    v7x's two TensorCores split the work, snapped to 256-row MXU passes when
    that costs little extra padding (v6e/v7x have 256-wide MXUs)."""
    tile_n = max(8, _round_up(tile_n, 8))
    num_tiles = max(1, -(-n // tile_n))
    if num_tiles == 1 and n >= 512:
        num_tiles = 2
    tile = _round_up(-(-n // num_tiles), 8)
    tile_mxu = _round_up(tile, 256)
    if tile >= 256 and num_tiles * tile_mxu <= _round_up(n, 8) + 64 * num_tiles:
        tile = tile_mxu
    return tile


# ---------------------------------------------------------------------------
# Forward pass (single fused pallas_call)
# ---------------------------------------------------------------------------
@functools.partial(jax.jit,
                   static_argnames=("batchnorm", "tile_n", "compute_dtype",
                                    "single_buffer_weights"))
def mlp_forward(params, x, batchnorm=True, tile_n=512,
                compute_dtype=jnp.bfloat16, single_buffer_weights=True):
    """x: [N, in_channels] f32 -> [N, out_channels] f32 log-probs (eval mode)."""
    num_layers = len(params["lins"])
    n, f_in = x.shape
    out_channels = params["lins"][-1][0].shape[1]

    # 1) Fold eval-mode BatchNorm into the preceding Linear.
    ws, bs = [], []
    for i in range(num_layers):
        w, b = params["lins"][i]
        if batchnorm and i < num_layers - 1:
            gamma, beta, mean, var = params["bns"][i]
            scale = gamma * jax.lax.rsqrt(var + BN_EPS)   # [1, H]
            w = w * scale
            b = (b - mean) * scale + beta
        ws.append(w)
        bs.append(b)

    # 2) Pad feature dims to 128 lanes; pick a balanced batch tile.
    dims = [f_in] + [w.shape[1] for w in ws]
    pdims = [_round_up(d, 128) for d in dims]
    tile = _choose_tile(n, tile_n)

    # 3) Generation-aware VMEM budget; shrink the tile if the estimate overflows.
    itemsize = jnp.dtype(compute_dtype).itemsize
    w_bufs = 1 if single_buffer_weights else 2
    budget = _vmem_budget_bytes()
    while tile > 64 and _vmem_estimate(tile, pdims, itemsize, w_bufs) > budget:
        tile = max(64, _round_up(tile // 2, 8))
    n_pad = _round_up(n, tile)
    # TODO(synk): if the resident weights alone exceed `budget` (huge hidden
    # dims on v7x's 64 MiB VMEM), stream them from HBM via pltpu.emit_pipeline
    # (or tile the output-feature dim) instead of keeping them VMEM-resident.

    # 4) Pad + cast operands. x is cast to the MXU dtype in the wrapper so its
    #    HBM DMA bytes and VMEM double-buffer are halved in bf16 mode.
    x_p = _pad2d(x, n_pad, pdims[0]).astype(compute_dtype)
    flat = []
    for i in range(num_layers):
        w_p = _pad2d(ws[i], pdims[i], pdims[i + 1]).astype(compute_dtype)
        # Padded classes of the last layer get a huge negative bias so the
        # log-softmax max/sum over the real classes is unchanged.
        pad_val = _NEG_BIG if i == num_layers - 1 else 0.0
        b_p = _pad2d(bs[i], 1, pdims[i + 1], value=pad_val)   # f32
        flat += [w_p, b_p]

    # 5) One fused pallas_call; grid over batch tiles only. Weights/biases use
    #    a constant index_map (no re-DMA) and a single buffer (no 2x alloc).
    wb_kwargs = dict(pipeline_mode=pl.Buffered(1)) if single_buffer_weights else {}
    in_specs = [pl.BlockSpec((tile, pdims[0]), lambda i: (i, 0))]
    for li in range(num_layers):
        fi, fo = pdims[li], pdims[li + 1]
        in_specs.append(pl.BlockSpec((fi, fo), lambda i: (0, 0), **wb_kwargs))
        in_specs.append(pl.BlockSpec((1, fo), lambda i: (0, 0), **wb_kwargs))
    out_specs = pl.BlockSpec((tile, pdims[-1]), lambda i: (i, 0))

    vmem_limit = int(min(max(_vmem_estimate(tile, pdims, itemsize, w_bufs),
                             8 << 20), budget))

    out_p = pl.pallas_call(
        _make_fused_mlp_kernel(num_layers, compute_dtype),
        out_shape=jax.ShapeDtypeStruct((n_pad, pdims[-1]), jnp.float32),
        grid=(n_pad // tile,),
        in_specs=in_specs,
        out_specs=out_specs,
        compiler_params=pltpu.CompilerParams(
            dimension_semantics=("parallel",),      # v7x: shard batch over 2 TCs
            vmem_limit_bytes=vmem_limit),
    )(x_p, *flat)

    return out_p[:n, :out_channels]


# ---------------------------------------------------------------------------
# Parameter init (shapes match the torch module) + pure-JAX reference
# ---------------------------------------------------------------------------
def init_mlp_params(key, in_channels, hidden_channels, out_channels,
                    num_layers, batchnorm=True):
    dims = ([in_channels] + [hidden_channels] * (num_layers - 1)
            + [out_channels])
    params = {"lins": [], "bns": []}
    for i in range(num_layers):
        key, kw, kb = jax.random.split(key, 3)
        fan_in, fan_out = dims[i], dims[i + 1]
        bound = 1.0 / jnp.sqrt(fan_in)
        # stored as [fan_in, fan_out] (transpose of torch's [out, in])
        w = jax.random.uniform(kw, (fan_in, fan_out), jnp.float32, -bound, bound)
        b = jax.random.uniform(kb, (1, fan_out), jnp.float32, -bound, bound)
        params["lins"].append((w, b))
    if batchnorm:
        for _ in range(num_layers - 1):
            key, kg, kbeta, km, kv = jax.random.split(key, 5)
            h = hidden_channels
            gamma = 1.0 + 0.1 * jax.random.normal(kg, (1, h), jnp.float32)
            beta = 0.1 * jax.random.normal(kbeta, (1, h), jnp.float32)
            mean = 0.1 * jax.random.normal(km, (1, h), jnp.float32)
            var = jnp.abs(1.0 + 0.1 * jax.random.normal(kv, (1, h), jnp.float32))
            params["bns"].append((gamma, beta, mean, var))
    return params


def mlp_forward_ref(params, x, batchnorm=True):
    hp = jax.lax.Precision.HIGHEST
    num_layers = len(params["lins"])
    for i in range(num_layers - 1):
        w, b = params["lins"][i]
        x = jnp.dot(x, w, precision=hp) + b
        if batchnorm:
            gamma, beta, mean, var = params["bns"][i]
            x = (x - mean) / jnp.sqrt(var + BN_EPS) * gamma + beta
        x = jnp.maximum(x, 0.0)
    w, b = params["lins"][-1]
    z = jnp.dot(x, w, precision=hp) + b
    return jax.nn.log_softmax(z, axis=-1)


if __name__ == "__main__":
    key = jax.random.PRNGKey(0)
    in_channels, hidden_channels, out_channels = 16, 32, 8
    num_layers = 3
    n = 8  # batch of node features

    kp, kx = jax.random.split(key)
    params = init_mlp_params(kp, in_channels, hidden_channels, out_channels,
                             num_layers, batchnorm=True)
    x = jax.random.normal(kx, (n, in_channels), jnp.float32)

    ref = mlp_forward_ref(params, x, batchnorm=True)

    def _run(single_buffer):
        o_bf16 = mlp_forward(params, x, batchnorm=True,
                             single_buffer_weights=single_buffer)
        o_f32 = mlp_forward(params, x, batchnorm=True,
                            compute_dtype=jnp.float32,
                            single_buffer_weights=single_buffer)
        return jax.block_until_ready((o_bf16, o_f32))

    try:
        out_bf16, out_f32 = _run(True)
    except Exception:
        # Fallback for jax builds without BlockSpec pipeline_mode support.
        out_bf16, out_f32 = _run(False)

    assert out_bf16.shape == (n, out_channels)
    assert out_f32.shape == (n, out_channels)
    # f32 + HIGHEST-precision path: strict check against the reference.
    assert jnp.allclose(out_f32, ref, atol=1e-4, rtol=1e-4), "f32 mismatch"
    # default bf16-MXU path: looser tolerance.
    assert jnp.allclose(out_bf16, ref, atol=5e-2, rtol=5e-2), "bf16 mismatch"

    print("KERNEL_OK")
</pallas_src>

<mosaic_0001>
module attributes {stable_mosaic.version = 11 : i64} {
  func.func @kernel(%arg0: i32, %arg1: memref<8x128xbf16, #tpu.memory_space<vmem>>, %arg2: memref<128x128xbf16, #tpu.memory_space<vmem>>, %arg3: memref<1x128xf32, #tpu.memory_space<vmem>>, %arg4: memref<128x128xbf16, #tpu.memory_space<vmem>>, %arg5: memref<1x128xf32, #tpu.memory_space<vmem>>, %arg6: memref<128x128xbf16, #tpu.memory_space<vmem>>, %arg7: memref<1x128xf32, #tpu.memory_space<vmem>>, %arg8: memref<8x128xf32, #tpu.memory_space<vmem>>) attributes {dimension_semantics = [#tpu.dimension_semantics<parallel>], iteration_bounds = array<i64: 1>, scalar_prefetch = 0 : i64, scratch_operands = 0 : i64, tpu.core_type = #tpu.core_type<tc>, window_params = [{transform_indices = @transform_0, window_bounds = array<i64: 8, 128>}, {pipeline_mode = #tpu.pipeline_mode<synchronous>, transform_indices = @transform_1, window_bounds = array<i64: 128, 128>}, {pipeline_mode = #tpu.pipeline_mode<synchronous>, transform_indices = @transform_2, window_bounds = array<i64: 1, 128>}, {pipeline_mode = #tpu.pipeline_mode<synchronous>, transform_indices = @transform_3, window_bounds = array<i64: 128, 128>}, {pipeline_mode = #tpu.pipeline_mode<synchronous>, transform_indices = @transform_4, window_bounds = array<i64: 1, 128>}, {pipeline_mode = #tpu.pipeline_mode<synchronous>, transform_indices = @transform_5, window_bounds = array<i64: 128, 128>}, {pipeline_mode = #tpu.pipeline_mode<synchronous>, transform_indices = @transform_6, window_bounds = array<i64: 1, 128>}, {transform_indices = @transform_7, window_bounds = array<i64: 8, 128>}]} {
    %c0 = arith.constant 0 : index
    %c0_0 = arith.constant 0 : index
    %0 = vector.load %arg1[%c0, %c0_0] : memref<8x128xbf16, #tpu.memory_space<vmem>>, vector<8x128xbf16>
    %c0_1 = arith.constant 0 : index
    %c0_2 = arith.constant 0 : index
    %1 = vector.load %arg2[%c0_1, %c0_2] : memref<128x128xbf16, #tpu.memory_space<vmem>>, vector<128x128xbf16>
    %cst = arith.constant dense<0.000000e+00> : vector<8x128xf32>
    %2 = tpu.matmul %0, %1, %cst {dimension_numbers = #tpu.dot_dimension_numbers<[1], [0], [0], [1], [0, 0, 1, 1], [], []>} : vector<8x128xbf16>, vector<128x128xbf16>, vector<8x128xf32> -> vector<8x128xf32>
    %c0_3 = arith.constant 0 : index
    %c0_4 = arith.constant 0 : index
    %3 = vector.load %arg3[%c0_3, %c0_4] : memref<1x128xf32, #tpu.memory_space<vmem>>, vector<1x128xf32>
    %4 = vector.broadcast %3 : vector<1x128xf32> to vector<8x128xf32>
    %5 = arith.addf %2, %4 : vector<8x128xf32>
    %cst_5 = arith.constant 0.000000e+00 : f32
    %6 = vector.broadcast %cst_5 : f32 to vector<8x128xf32>
    %7 = arith.maximumf %5, %6 : vector<8x128xf32>
    %8 = arith.truncf %7 : vector<8x128xf32> to vector<8x128xbf16>
    %c0_6 = arith.constant 0 : index
    %c0_7 = arith.constant 0 : index
    %9 = vector.load %arg4[%c0_6, %c0_7] : memref<128x128xbf16, #tpu.memory_space<vmem>>, vector<128x128xbf16>
    %cst_8 = arith.constant dense<0.000000e+00> : vector<8x128xf32>
    %10 = tpu.matmul %8, %9, %cst_8 {dimension_numbers = #tpu.dot_dimension_numbers<[1], [0], [0], [1], [0, 0, 1, 1], [], []>} : vector<8x128xbf16>, vector<128x128xbf16>, vector<8x128xf32> -> vector<8x128xf32>
    %c0_9 = arith.constant 0 : index
    %c0_10 = arith.constant 0 : index
    %11 = vector.load %arg5[%c0_9, %c0_10] : memref<1x128xf32, #tpu.memory_space<vmem>>, vector<1x128xf32>
    %12 = vector.broadcast %11 : vector<1x128xf32> to vector<8x128xf32>
    %13 = arith.addf %10, %12 : vector<8x128xf32>
    %cst_11 = arith.constant 0.000000e+00 : f32
    %14 = vector.broadcast %cst_11 : f32 to vector<8x128xf32>
    %15 = arith.maximumf %13, %14 : vector<8x128xf32>
    %16 = arith.truncf %15 : vector<8x128xf32> to vector<8x128xbf16>
    %c0_12 = arith.constant 0 : index
    %c0_13 = arith.constant 0 : index
    %17 = vector.load %arg6[%c0_12, %c0_13] : memref<128x128xbf16, #tpu.memory_space<vmem>>, vector<128x128xbf16>
    %cst_14 = arith.constant dense<0.000000e+00> : vector<8x128xf32>
    %18 = tpu.matmul %16, %17, %cst_14 {dimension_numbers = #tpu.dot_dimension_numbers<[1], [0], [0], [1], [0, 0, 1, 1], [], []>} : vector<8x128xbf16>, vector<128x128xbf16>, vector<8x128xf32> -> vector<8x128xf32>
    %c0_15 = arith.constant 0 : index
    %c0_16 = arith.constant 0 : index
    %19 = vector.load %arg7[%c0_15, %c0_16] : memref<1x128xf32, #tpu.memory_space<vmem>>, vector<1x128xf32>
    %20 = vector.broadcast %19 : vector<1x128xf32> to vector<8x128xf32>
    %21 = arith.addf %18, %20 : vector<8x128xf32>
    %cst_17 = arith.constant dense<0xFF800000> : vector<8xf32>
    %22 = vector.multi_reduction <maximumf>, %21, %cst_17 [1] : vector<8x128xf32> to vector<8xf32>
    %23 = vector.shape_cast %22 : vector<8xf32> to vector<8x1xf32>
    %24 = vector.broadcast %23 : vector<8x1xf32> to vector<8x128xf32>
    %25 = arith.subf %21, %24 : vector<8x128xf32>
    %26 = math.exp %25 : vector<8x128xf32>
    %cst_18 = arith.constant dense<0.000000e+00> : vector<8xf32>
    %27 = vector.multi_reduction <add>, %26, %cst_18 [1] : vector<8x128xf32> to vector<8xf32>
    %28 = vector.shape_cast %27 : vector<8xf32> to vector<8x1xf32>
    %29 = math.log %28 : vector<8x1xf32>
    %30 = arith.addf %23, %29 : vector<8x1xf32>
    %31 = vector.broadcast %30 : vector<8x1xf32> to vector<8x128xf32>
    %32 = arith.subf %21, %31 : vector<8x128xf32>
    %c0_19 = arith.constant 0 : index
    %c0_20 = arith.constant 0 : index
    %33 = vector.load %arg8[%c0_19, %c0_20] : memref<8x128xf32, #tpu.memory_space<vmem>>, vector<8x128xf32>
    tpu.vector_store %arg8[%c0_19, %c0_20], %32 {strides = array<i32>} : memref<8x128xf32, #tpu.memory_space<vmem>>, vector<8x128xf32>,
    return
  }
  func.func @transform_0(%arg0: i32) -> (i32, i32) {
    %c0_i32 = arith.constant 0 : i32
    %c0_i32_0 = arith.constant 0 : i32
    return %arg0, %c0_i32 : i32, i32
  }
  func.func @transform_1(%arg0: i32) -> (i32, i32) {
    %c0_i32 = arith.constant 0 : i32
    %c0_i32_0 = arith.constant 0 : i32
    %c0_i32_1 = arith.constant 0 : i32
    return %c0_i32, %c0_i32_0 : i32, i32
  }
  func.func @transform_2(%arg0: i32) -> (i32, i32) {
    %c0_i32 = arith.constant 0 : i32
    %c0_i32_0 = arith.constant 0 : i32
    %c0_i32_1 = arith.constant 0 : i32
    return %c0_i32, %c0_i32_0 : i32, i32
  }
  func.func @transform_3(%arg0: i32) -> (i32, i32) {
    %c0_i32 = arith.constant 0 : i32
    %c0_i32_0 = arith.constant 0 : i32
    %c0_i32_1 = arith.constant 0 : i32
    return %c0_i32, %c0_i32_0 : i32, i32
  }
  func.func @transform_4(%arg0: i32) -> (i32, i32) {
    %c0_i32 = arith.constant 0 : i32
    %c0_i32_0 = arith.constant 0 : i32
    %c0_i32_1 = arith.constant 0 : i32
    return %c0_i32, %c0_i32_0 : i32, i32
  }
  func.func @transform_5(%arg0: i32) -> (i32, i32) {
    %c0_i32 = arith.constant 0 : i32
    %c0_i32_0 = arith.constant 0 : i32
    %c0_i32_1 = arith.constant 0 : i32
    return %c0_i32, %c0_i32_0 : i32, i32
  }
  func.func @transform_6(%arg0: i32) -> (i32, i32) {
    %c0_i32 = arith.constant 0 : i32
    %c0_i32_0 = arith.constant 0 : i32
    %c0_i32_1 = arith.constant 0 : i32
    return %c0_i32, %c0_i32_0 : i32, i32
  }
  func.func @transform_7(%arg0: i32) -> (i32, i32) {
    %c0_i32 = arith.constant 0 : i32
    %c0_i32_0 = arith.constant 0 : i32
    return %arg0, %c0_i32 : i32, i32
  }
}

module attributes {stable_mosaic.version = 11 : i64} {
  func.func @kernel(%arg0: i32, %arg1: memref<8x128xbf16, #tpu.memory_space<vmem>>, %arg2: memref<128x128xbf16, #tpu.memory_space<vmem>>, %arg3: memref<1x128xf32, #tpu.memory_space<vmem>>, %arg4: memref<128x128xbf16, #tpu.memory_space<vmem>>, %arg5: memref<1x128xf32, #tpu.memory_space<vmem>>, %arg6: memref<128x128xbf16, #tpu.memory_space<vmem>>, %arg7: memref<1x128xf32, #tpu.memory_space<vmem>>, %arg8: memref<8x128xf32, #tpu.memory_space<vmem>>) attributes {dimension_semantics = [#tpu.dimension_semantics<parallel>], iteration_bounds = array<i64: 1>, scalar_prefetch = 0 : i64, scratch_operands = 0 : i64, tpu.core_type = #tpu.core_type<tc>, window_params = [{transform_indices = @transform_0, window_bounds = array<i64: 8, 128>}, {pipeline_mode = #tpu.pipeline_mode<synchronous>, transform_indices = @transform_1, window_bounds = array<i64: 128, 128>}, {pipeline_mode = #tpu.pipeline_mode<synchronous>, transform_indices = @transform_2, window_bounds = array<i64: 1, 128>}, {pipeline_mode = #tpu.pipeline_mode<synchronous>, transform_indices = @transform_3, window_bounds = array<i64: 128, 128>}, {pipeline_mode = #tpu.pipeline_mode<synchronous>, transform_indices = @transform_4, window_bounds = array<i64: 1, 128>}, {pipeline_mode = #tpu.pipeline_mode<synchronous>, transform_indices = @transform_5, window_bounds = array<i64: 128, 128>}, {pipeline_mode = #tpu.pipeline_mode<synchronous>, transform_indices = @transform_6, window_bounds = array<i64: 1, 128>}, {transform_indices = @transform_7, window_bounds = array<i64: 8, 128>}]} {
    %c0 = arith.constant 0 : index
    %c0_0 = arith.constant 0 : index
    %0 = vector.load %arg1[%c0, %c0_0] : memref<8x128xbf16, #tpu.memory_space<vmem>>, vector<8x128xbf16>
    %c0_1 = arith.constant 0 : index
    %c0_2 = arith.constant 0 : index
    %1 = vector.load %arg2[%c0_1, %c0_2] : memref<128x128xbf16, #tpu.memory_space<vmem>>, vector<128x128xbf16>
    %cst = arith.constant dense<0.000000e+00> : vector<8x128xf32>
    %2 = tpu.matmul %0, %1, %cst {dimension_numbers = #tpu.dot_dimension_numbers<[1], [0], [0], [1], [0, 0, 1, 1], [], []>} : vector<8x128xbf16>, vector<128x128xbf16>, vector<8x128xf32> -> vector<8x128xf32>
    %c0_3 = arith.constant 0 : index
    %c0_4 = arith.constant 0 : index
    %3 = vector.load %arg3[%c0_3, %c0_4] : memref<1x128xf32, #tpu.memory_space<vmem>>, vector<1x128xf32>
    %4 = vector.broadcast %3 : vector<1x128xf32> to vector<8x128xf32>
    %5 = arith.addf %2, %4 : vector<8x128xf32>
    %cst_5 = arith.constant 0.000000e+00 : f32
    %6 = vector.broadcast %cst_5 : f32 to vector<8x128xf32>
    %7 = arith.maximumf %5, %6 : vector<8x128xf32>
    %8 = arith.truncf %7 : vector<8x128xf32> to vector<8x128xbf16>
    %c0_6 = arith.constant 0 : index
    %c0_7 = arith.constant 0 : index
    %9 = vector.load %arg4[%c0_6, %c0_7] : memref<128x128xbf16, #tpu.memory_space<vmem>>, vector<128x128xbf16>
    %cst_8 = arith.constant dense<0.000000e+00> : vector<8x128xf32>
    %10 = tpu.matmul %8, %9, %cst_8 {dimension_numbers = #tpu.dot_dimension_numbers<[1], [0], [0], [1], [0, 0, 1, 1], [], []>} : vector<8x128xbf16>, vector<128x128xbf16>, vector<8x128xf32> -> vector<8x128xf32>
    %c0_9 = arith.constant 0 : index
    %c0_10 = arith.constant 0 : index
    %11 = vector.load %arg5[%c0_9, %c0_10] : memref<1x128xf32, #tpu.memory_space<vmem>>, vector<1x128xf32>
    %12 = vector.broadcast %11 : vector<1x128xf32> to vector<8x128xf32>
    %13 = arith.addf %10, %12 : vector<8x128xf32>
    %cst_11 = arith.constant 0.000000e+00 : f32
    %14 = vector.broadcast %cst_11 : f32 to vector<8x128xf32>
    %15 = arith.maximumf %13, %14 : vector<8x128xf32>
    %16 = arith.truncf %15 : vector<8x128xf32> to vector<8x128xbf16>
    %c0_12 = arith.constant 0 : index
    %c0_13 = arith.constant 0 : index
    %17 = vector.load %arg6[%c0_12, %c0_13] : memref<128x128xbf16, #tpu.memory_space<vmem>>, vector<128x128xbf16>
    %cst_14 = arith.constant dense<0.000000e+00> : vector<8x128xf32>
    %18 = tpu.matmul %16, %17, %cst_14 {dimension_numbers = #tpu.dot_dimension_numbers<[1], [0], [0], [1], [0, 0, 1, 1], [], []>} : vector<8x128xbf16>, vector<128x128xbf16>, vector<8x128xf32> -> vector<8x128xf32>
    %c0_15 = arith.constant 0 : index
    %c0_16 = arith.constant 0 : index
    %19 = vector.load %arg7[%c0_15, %c0_16] : memref<1x128xf32, #tpu.memory_space<vmem>>, vector<1x128xf32>
    %20 = vector.broadcast %19 : vector<1x128xf32> to vector<8x128xf32>
    %21 = arith.addf %18, %20 : vector<8x128xf32>
    %cst_17 = arith.constant dense<0xFF800000> : vector<8xf32>
    %22 = vector.multi_reduction <maximumf>, %21, %cst_17 [1] : vector<8x128xf32> to vector<8xf32>
    %23 = vector.shape_cast %22 : vector<8xf32> to vector<8x1xf32>
    %24 = vector.broadcast %23 : vector<8x1xf32> to vector<8x128xf32>
    %25 = arith.subf %21, %24 : vector<8x128xf32>
    %26 = math.exp %25 : vector<8x128xf32>
    %cst_18 = arith.constant dense<0.000000e+00> : vector<8xf32>
    %27 = vector.multi_reduction <add>, %26, %cst_18 [1] : vector<8x128xf32> to vector<8xf32>
    %28 = vector.shape_cast %27 : vector<8xf32> to vector<8x1xf32>
    %29 = math.log %28 : vector<8x1xf32>
    %30 = arith.addf %23, %29 : vector<8x1xf32>
    %31 = vector.broadcast %30 : vector<8x1xf32> to vector<8x128xf32>
    %32 = arith.subf %21, %31 : vector<8x128xf32>
    %c0_19 = arith.constant 0 : index
    %c0_20 = arith.constant 0 : index
    %33 = vector.load %arg8[%c0_19, %c0_20] : memref<8x128xf32, #tpu.memory_space<vmem>>, vector<8x128xf32>
    tpu.vector_store %arg8[%c0_19, %c0_20], %32 {strides = array<i32>} : memref<8x128xf32, #tpu.memory_space<vmem>>, vector<8x128xf32>,
    return
  }
  func.func @transform_0(%arg0: i32) -> (i32, i32) {
    %c0_i32 = arith.constant 0 : i32
    %c0_i32_0 = arith.constant 0 : i32
    return %arg0, %c0_i32 : i32, i32
  }
  func.func @transform_1(%arg0: i32) -> (i32, i32) {
    %c0_i32 = arith.constant 0 : i32
    %c0_i32_0 = arith.constant 0 : i32
    %c0_i32_1 = arith.constant 0 : i32
    return %c0_i32, %c0_i32_0 : i32, i32
  }
  func.func @transform_2(%arg0: i32) -> (i32, i32) {
    %c0_i32 = arith.constant 0 : i32
    %c0_i32_0 = arith.constant 0 : i32
    %c0_i32_1 = arith.constant 0 : i32
    return %c0_i32, %c0_i32_0 : i32, i32
  }
  func.func @transform_3(%arg0: i32) -> (i32, i32) {
    %c0_i32 = arith.constant 0 : i32
    %c0_i32_0 = arith.constant 0 : i32
    %c0_i32_1 = arith.constant 0 : i32
    return %c0_i32, %c0_i32_0 : i32, i32
  }
  func.func @transform_4(%arg0: i32) -> (i32, i32) {
    %c0_i32 = arith.constant 0 : i32
    %c0_i32_0 = arith.constant 0 : i32
    %c0_i32_1 = arith.constant 0 : i32
    return %c0_i32, %c0_i32_0 : i32, i32
  }
  func.func @transform_5(%arg0: i32) -> (i32, i32) {
    %c0_i32 = arith.constant 0 : i32
    %c0_i32_0 = arith.constant 0 : i32
    %c0_i32_1 = arith.constant 0 : i32
    return %c0_i32, %c0_i32_0 : i32, i32
  }
  func.func @transform_6(%arg0: i32) -> (i32, i32) {
    %c0_i32 = arith.constant 0 : i32
    %c0_i32_0 = arith.constant 0 : i32
    %c0_i32_1 = arith.constant 0 : i32
    return %c0_i32, %c0_i32_0 : i32, i32
  }
  func.func @transform_7(%arg0: i32) -> (i32, i32) {
    %c0_i32 = arith.constant 0 : i32
    %c0_i32_0 = arith.constant 0 : i32
    return %arg0, %c0_i32 : i32, i32
  }
}

</mosaic_0001>

<llo_original>
// kernel: mlp_forward.1
$region0: #{mlp_forward.1}
  #allocation0 [shape = 'u32[]', space=smem, size = 0x4, offset = 0x4, fixed_abs, tag = 'smem constant byte address 0x4 - core index']
  #allocation1 [shape = 'u32[144,128]{1,0:T(1,128)}', space=vmem, size = 0x12000, scoped, tag = 'internal scratch']
  %s0 = inlined_call_operand.vmem [shape: bf16[8,128], index: 0, kind: input, shape index: {}]
  %s1 = inlined_call_operand.vmem [shape: bf16[128,128], index: 1, kind: input, shape index: {}]
  %s2 = inlined_call_operand.vmem [shape: f32[1,128], index: 2, kind: input, shape index: {}]
  %s3 = inlined_call_operand.vmem [shape: bf16[128,128], index: 3, kind: input, shape index: {}]
  %s4 = inlined_call_operand.vmem [shape: f32[1,128], index: 4, kind: input, shape index: {}]
  %s5 = inlined_call_operand.vmem [shape: bf16[128,128], index: 5, kind: input, shape index: {}]
  %s6 = inlined_call_operand.vmem [shape: f32[1,128], index: 6, kind: input, shape index: {}]
  %s7 = inlined_call_operand.hbm [shape: f32[8,128], index: 7, kind: output, shape index: {}]
  %s8 = sld [smem:[#allocation0]]
  $region38: #{mlp_forward.1} parent=0
    _
  %s10 = ssub.s32 1, %s8
  %s11 = scalar_select 0, %s10, %s8
  $region1: #{mlp_forward.1} parent=0
    #allocation2 [shape = 'u8[4096]{0}', space=vmem, size = 0x1000, scoped, tag = 'output window, operand 0, single buffered']
    #allocation3 [shape = 's32[1]{0}', space=sflag, size = 0x4, scoped, tag = 'scoped memory for mlp_forward.1']
    %12 = vsyncpa [#allocation3], 0
    // Predicated region
    $region2: #{mlp_forward.1} parent=1 // pred_check
      _
    $region3: #{mlp_forward.1} parent=1 // pred_check_branch
      %14 = sbr.rel (0) target = $region5
    $region4: #{mlp_forward.1} parent=1 // pred_region
      _
    $region5: #{mlp_forward.1} parent=1 // pred_fallthru
      _
    // Predicated region
    $region6: #{mlp_forward.1} parent=1 // pred_check
      _
    $region7: #{mlp_forward.1} parent=1 // pred_check_branch
      %16 = sbr.rel (0) target = $region9
    $region8: #{mlp_forward.1} parent=1 // pred_region
      _
    $region9: #{mlp_forward.1} parent=1 // pred_fallthru
      _
    // Predicated region
    $region10: #{mlp_forward.1} parent=1 // pred_check
      _
    $region11: #{mlp_forward.1} parent=1 // pred_check_branch
      %18 = sbr.rel (0) target = $region13
    $region12: #{mlp_forward.1} parent=1 // pred_region
      _
    $region13: #{mlp_forward.1} parent=1 // pred_fallthru
      _
    // Predicated region
    $region14: #{mlp_forward.1} parent=1 // pred_check
      _
    $region15: #{mlp_forward.1} parent=1 // pred_check_branch
      %20 = sbr.rel (0) target = $region17
    $region16: #{mlp_forward.1} parent=1 // pred_region
      _
    $region17: #{mlp_forward.1} parent=1 // pred_fallthru
      _
    // Predicated region
    $region18: #{mlp_forward.1} parent=1 // pred_check
      _
    $region19: #{mlp_forward.1} parent=1 // pred_check_branch
      %22 = sbr.rel (0) target = $region21
    $region20: #{mlp_forward.1} parent=1 // pred_region
      _
    $region21: #{mlp_forward.1} parent=1 // pred_fallthru
      _
    // Predicated region
    $region22: #{mlp_forward.1} parent=1 // pred_check
      _
    $region23: #{mlp_forward.1} parent=1 // pred_check_branch
      %24 = sbr.rel (0) target = $region25
    $region24: #{mlp_forward.1} parent=1 // pred_region
      _
    $region25: #{mlp_forward.1} parent=1 // pred_fallthru
      _
    // Predicated region
    $region26: #{mlp_forward.1} parent=1 // pred_check
      _
    $region27: #{mlp_forward.1} parent=1 // pred_check_branch
      %26 = sbr.rel (0) target = $region29
    $region28: #{mlp_forward.1} parent=1 // pred_region
      _
    $region29: #{mlp_forward.1} parent=1 // pred_fallthru
      _
    %v28 = vld [vmem:[%s0] sm:$0xf]
    %v29 = vld [vmem:[%s1] sm:$0xf]
    %v30 = vld [vmem:[%s1 + $0x4] sm:$0xf]
    %v31 = vld [vmem:[%s1 + $0x8] sm:$0xf]
    %v32 = vld [vmem:[%s1 + $0xc] sm:$0xf]
    %v33 = vld [vmem:[%s1 + $0x10] sm:$0xf]
    %v34 = vld [vmem:[%s1 + $0x14] sm:$0xf]
    %v35 = vld [vmem:[%s1 + $0x18] sm:$0xf]
    %v36 = vld [vmem:[%s1 + $0x1c] sm:$0xf]
    %v37 = vld [vmem:[%s1 + $0x20] sm:$0xf]
    %v38 = vld [vmem:[%s1 + $0x24] sm:$0xf]
    %v39 = vld [vmem:[%s1 + $0x28] sm:$0xf]
    %v40 = vld [vmem:[%s1 + $0x2c] sm:$0xf]
    %v41 = vld [vmem:[%s1 + $0x30] sm:$0xf]
    %v42 = vld [vmem:[%s1 + $0x34] sm:$0xf]
    %v43 = vld [vmem:[%s1 + $0x38] sm:$0xf]
    %v44 = vld [vmem:[%s1 + $0x3c] sm:$0xf]
    %v45 = vld [vmem:[%s2] sm:$0x1]
    %v47 = vlaneseq
    %v48 = vshrl.u32 %v47, 7
    %v49 = vsub.s32 0, %v48
    %v50 = vrot.slane %v45, %v49
    %v68 = vunpack.c.l.b16 %v29
    %v69 = vunpack.c.l.b16 %v30
    %v70 = vunpack.c.l.b16 %v31
    %v71 = vunpack.c.l.b16 %v32
    %v72 = vunpack.c.l.b16 %v33
    %v73 = vunpack.c.l.b16 %v34
    %v74 = vunpack.c.l.b16 %v35
    %v75 = vunpack.c.l.b16 %v36
    %v76 = vunpack.c.l.b16 %v37
    %v77 = vunpack.c.l.b16 %v38
    %v78 = vunpack.c.l.b16 %v39
    %v79 = vunpack.c.l.b16 %v40
    %v80 = vunpack.c.l.b16 %v41
    %v81 = vunpack.c.l.b16 %v42
    %v82 = vunpack.c.l.b16 %v43
    %v83 = vunpack.c.l.b16 %v44
    %v84 = vpack.c.b16 %v69, %v68
    %v85 = vpack.c.b16 %v71, %v70
    %v86 = vpack.c.b16 %v73, %v72
    %v87 = vpack.c.b16 %v75, %v74
    %v88 = vpack.c.b16 %v77, %v76
    %v89 = vpack.c.b16 %v79, %v78
    %v90 = vpack.c.b16 %v81, %v80
    %v91 = vpack.c.b16 %v83, %v82
    %100 = vmatprep.subr.bf16.mxu0 0
    %101 = vmatpush1.bf16.msra.mxu0 %v84
    %102 = vmatprep.subr.bf16.mxu0 0
    %103 = vmatpush1.bf16.msra.mxu0 %v85
    %104 = vmatprep.subr.bf16.mxu0 0
    %105 = vmatpush1.bf16.msra.mxu0 %v86
    %106 = vmatprep.subr.bf16.mxu0 0
    %107 = vmatpush1.bf16.msra.mxu0 %v87
    %108 = vmatprep.subr.bf16.mxu0 0
    %109 = vmatpush1.bf16.msra.mxu0 %v88
    %110 = vmatprep.subr.bf16.mxu0 0
    %111 = vmatpush1.bf16.msra.mxu0 %v89
    %112 = vmatprep.subr.bf16.mxu0 0
    %113 = vmatpush1.bf16.msra.mxu0 %v90
    %114 = vmatprep.subr.bf16.mxu0 0
    %115 = vmatpush1.bf16.msra.mxu0 %v91
    %116 = vmatprep.subr.bf16.mxu0 0
    %117 = vmatpush1.bf16.msra.mxu0 0
    %118 = vmatprep.subr.bf16.mxu0 0
    %119 = vmatpush1.bf16.msra.mxu0 0
    %120 = vmatprep.subr.bf16.mxu0 0
    %121 = vmatpush1.bf16.msra.mxu0 0
    %122 = vmatprep.subr.bf16.mxu0 0
    %123 = vmatpush1.bf16.msra.mxu0 0
    %124 = vmatprep.subr.bf16.mxu0 0
    %125 = vmatpush1.bf16.msra.mxu0 0
    %126 = vmatprep.subr.bf16.mxu0 0
    %127 = vmatpush1.bf16.msra.mxu0 0
    %128 = vmatprep.subr.bf16.mxu0 0
    %129 = vmatpush1.bf16.msra.mxu0 0
    %130 = vmatprep.subr.bf16.mxu0 0
    %131 = vmatpush1.bf16.msra.mxu0 0
    %132 = vmatprep.mubr.bf16.mxu0 0
    %133 = vmatmul.mubr.bf16.gmra.mrb[0].mxu0 %v28
    %v134 = vpop.f32.mrb[0].mxu0
    %v135 = vadd.f32 %v50, %v134
    %v136 = vpop.f32.mrb[0].mxu0
    %v137 = vpop.f32.mrb[0].mxu0
    %v138 = vpop.f32.mrb[0].mxu0
    %139 = vdwg.mxu0
    %v140 = vmax.f32 %v135, 0.0
    %v141 = vpack.c.bf16 %v140, %v140
    %v142 = vld [vmem:[%s3] sm:$0xf]
    %v143 = vld [vmem:[%s3 + $0x4] sm:$0xf]
    %v144 = vld [vmem:[%s3 + $0x8] sm:$0xf]
    %v145 = vld [vmem:[%s3 + $0xc] sm:$0xf]
    %v146 = vld [vmem:[%s3 + $0x10] sm:$0xf]
    %v147 = vld [vmem:[%s3 + $0x14] sm:$0xf]
    %v148 = vld [vmem:[%s3 + $0x18] sm:$0xf]
    %v149 = vld [vmem:[%s3 + $0x1c] sm:$0xf]
    %v150 = vld [vmem:[%s3 + $0x20] sm:$0xf]
    %v151 = vld [vmem:[%s3 + $0x24] sm:$0xf]
    %v152 = vld [vmem:[%s3 + $0x28] sm:$0xf]
    %v153 = vld [vmem:[%s3 + $0x2c] sm:$0xf]
    %v154 = vld [vmem:[%s3 + $0x30] sm:$0xf]
    %v155 = vld [vmem:[%s3 + $0x34] sm:$0xf]
    %v156 = vld [vmem:[%s3 + $0x38] sm:$0xf]
    %v157 = vld [vmem:[%s3 + $0x3c] sm:$0xf]
    %v158 = vld [vmem:[%s4] sm:$0x1]
    %v160 = vlaneseq
    %v161 = vshrl.u32 %v160, 7
    %v162 = vsub.s32 0, %v161
    %v163 = vrot.slane %v158, %v162
    %v181 = vunpack.c.l.b16 %v142
    %v182 = vunpack.c.l.b16 %v143
    %v183 = vunpack.c.l.b16 %v144
    %v184 = vunpack.c.l.b16 %v145
    %v185 = vunpack.c.l.b16 %v146
    %v186 = vunpack.c.l.b16 %v147
    %v187 = vunpack.c.l.b16 %v148
    %v188 = vunpack.c.l.b16 %v149
    %v189 = vunpack.c.l.b16 %v150
    %v190 = vunpack.c.l.b16 %v151
    %v191 = vunpack.c.l.b16 %v152
    %v192 = vunpack.c.l.b16 %v153
    %v193 = vunpack.c.l.b16 %v154
    %v194 = vunpack.c.l.b16 %v155
    %v195 = vunpack.c.l.b16 %v156
    %v196 = vunpack.c.l.b16 %v157
    %v197 = vpack.c.b16 %v182, %v181
    %v198 = vpack.c.b16 %v184, %v183
    %v199 = vpack.c.b16 %v186, %v185
    %v200 = vpack.c.b16 %v188, %v187
    %v201 = vpack.c.b16 %v190, %v189
    %v202 = vpack.c.b16 %v192, %v191
    %v203 = vpack.c.b16 %v194, %v193
    %v204 = vpack.c.b16 %v196, %v195
    %213 = vmatprep.subr.bf16.mxu0 0
    %214 = vmatpush1.bf16.msra.mxu0 %v197
    %215 = vmatprep.subr.bf16.mxu0 0
    %216 = vmatpush1.bf16.msra.mxu0 %v198
    %217 = vmatprep.subr.bf16.mxu0 0
    %218 = vmatpush1.bf16.msra.mxu0 %v199
    %219 = vmatprep.subr.bf16.mxu0 0
    %220 = vmatpush1.bf16.msra.mxu0 %v200
    %221 = vmatprep.subr.bf16.mxu0 0
    %222 = vmatpush1.bf16.msra.mxu0 %v201
    %223 = vmatprep.subr.bf16.mxu0 0
    %224 = vmatpush1.bf16.msra.mxu0 %v202
    %225 = vmatprep.subr.bf16.mxu0 0
    %226 = vmatpush1.bf16.msra.mxu0 %v203
    %227 = vmatprep.subr.bf16.mxu0 0
    %228 = vmatpush1.bf16.msra.mxu0 %v204
    %229 = vmatprep.subr.bf16.mxu0 0
    %230 = vmatpush1.bf16.msra.mxu0 0
    %231 = vmatprep.subr.bf16.mxu0 0
    %232 = vmatpush1.bf16.msra.mxu0 0
    %233 = vmatprep.subr.bf16.mxu0 0
    %234 = vmatpush1.bf16.msra.mxu0 0
    %235 = vmatprep.subr.bf16.mxu0 0
    %236 = vmatpush1.bf16.msra.mxu0 0
    %237 = vmatprep.subr.bf16.mxu0 0
    %238 = vmatpush1.bf16.msra.mxu0 0
    %239 = vmatprep.subr.bf16.mxu0 0
    %240 = vmatpush1.bf16.msra.mxu0 0
    %241 = vmatprep.subr.bf16.mxu0 0
    %242 = vmatpush1.bf16.msra.mxu0 0
    %243 = vmatprep.subr.bf16.mxu0 0
    %244 = vmatpush1.bf16.msra.mxu0 0
    %245 = vmatprep.mubr.bf16.mxu0 0
    %246 = vmatmul.mubr.bf16.gmra.mrb[0].mxu0 %v141
    %v247 = vpop.f32.mrb[0].mxu0
    %v248 = vadd.f32 %v163, %v247
    %v249 = vpop.f32.mrb[0].mxu0
    %v250 = vpop.f32.mrb[0].mxu0
    %v251 = vpop.f32.mrb[0].mxu0
    %252 = vdwg.mxu0
    %v253 = vmax.f32 %v248, 0.0
    %v254 = vpack.c.bf16 %v253, %v253
    %v255 = vld [vmem:[%s5] sm:$0xf]
    %v256 = vld [vmem:[%s5 + $0x4] sm:$0xf]
    %v257 = vld [vmem:[%s5 + $0x8] sm:$0xf]
    %v258 = vld [vmem:[%s5 + $0xc] sm:$0xf]
    %v259 = vld [vmem:[%s5 + $0x10] sm:$0xf]
    %v260 = vld [vmem:[%s5 + $0x14] sm:$0xf]
    %v261 = vld [vmem:[%s5 + $0x18] sm:$0xf]
    %v262 = vld [vmem:[%s5 + $0x1c] sm:$0xf]
    %v263 = vld [vmem:[%s5 + $0x20] sm:$0xf]
    %v264 = vld [vmem:[%s5 + $0x24] sm:$0xf]
    %v265 = vld [vmem:[%s5 + $0x28] sm:$0xf]
    %v266 = vld [vmem:[%s5 + $0x2c] sm:$0xf]
    %v267 = vld [vmem:[%s5 + $0x30] sm:$0xf]
    %v268 = vld [vmem:[%s5 + $0x34] sm:$0xf]
    %v269 = vld [vmem:[%s5 + $0x38] sm:$0xf]
    %v270 = vld [vmem:[%s5 + $0x3c] sm:$0xf]
    %v271 = vld [vmem:[%s6] sm:$0x1]
    %v273 = vlaneseq
    %v274 = vshrl.u32 %v273, 7
    %v275 = vsub.s32 0, %v274
    %v276 = vrot.slane %v271, %v275
    %v294 = vunpack.c.l.b16 %v255
    %v295 = vunpack.c.l.b16 %v256
    %v296 = vunpack.c.l.b16 %v257
    %v297 = vunpack.c.l.b16 %v258
    %v298 = vunpack.c.l.b16 %v259
    %v299 = vunpack.c.l.b16 %v260
    %v300 = vunpack.c.l.b16 %v261
    %v301 = vunpack.c.l.b16 %v262
    %v302 = vunpack.c.l.b16 %v263
    %v303 = vunpack.c.l.b16 %v264
    %v304 = vunpack.c.l.b16 %v265
    %v305 = vunpack.c.l.b16 %v266
    %v306 = vunpack.c.l.b16 %v267
    %v307 = vunpack.c.l.b16 %v268
    %v308 = vunpack.c.l.b16 %v269
    %v309 = vunpack.c.l.b16 %v270
    %v310 = vpack.c.b16 %v295, %v294
    %v311 = vpack.c.b16 %v297, %v296
    %v312 = vpack.c.b16 %v299, %v298
    %v313 = vpack.c.b16 %v301, %v300
    %v314 = vpack.c.b16 %v303, %v302
    %v315 = vpack.c.b16 %v305, %v304
    %v316 = vpack.c.b16 %v307, %v306
    %v317 = vpack.c.b16 %v309, %v308
    %326 = vmatprep.subr.bf16.mxu0 0
    %327 = vmatpush1.bf16.msra.mxu0 %v310
    %328 = vmatprep.subr.bf16.mxu0 0
    %329 = vmatpush1.bf16.msra.mxu0 %v311
    %330 = vmatprep.subr.bf16.mxu0 0
    %331 = vmatpush1.bf16.msra.mxu0 %v312
    %332 = vmatprep.subr.bf16.mxu0 0
    %333 = vmatpush1.bf16.msra.mxu0 %v313
    %334 = vmatprep.subr.bf16.mxu0 0
    %335 = vmatpush1.bf16.msra.mxu0 %v314
    %336 = vmatprep.subr.bf16.mxu0 0
    %337 = vmatpush1.bf16.msra.mxu0 %v315
    %338 = vmatprep.subr.bf16.mxu0 0
    %339 = vmatpush1.bf16.msra.mxu0 %v316
    %340 = vmatprep.subr.bf16.mxu0 0
    %341 = vmatpush1.bf16.msra.mxu0 %v317
    %342 = vmatprep.subr.bf16.mxu0 0
    %343 = vmatpush1.bf16.msra.mxu0 0
    %344 = vmatprep.subr.bf16.mxu0 0
    %345 = vmatpush1.bf16.msra.mxu0 0
    %346 = vmatprep.subr.bf16.mxu0 0
    %347 = vmatpush1.bf16.msra.mxu0 0
    %348 = vmatprep.subr.bf16.mxu0 0
    %349 = vmatpush1.bf16.msra.mxu0 0
    %350 = vmatprep.subr.bf16.mxu0 0
    %351 = vmatpush1.bf16.msra.mxu0 0
    %352 = vmatprep.subr.bf16.mxu0 0
    %353 = vmatpush1.bf16.msra.mxu0 0
    %354 = vmatprep.subr.bf16.mxu0 0
    %355 = vmatpush1.bf16.msra.mxu0 0
    %356 = vmatprep.subr.bf16.mxu0 0
    %357 = vmatpush1.bf16.msra.mxu0 0
    %358 = vmatprep.mubr.bf16.mxu0 0
    %359 = vmatmul.mubr.bf16.gmra.mrb[0].mxu0 %v254
    %v360 = vpop.f32.mrb[0].mxu0
    %v361 = vadd.f32 %v276, %v360
    %v362 = vpop.f32.mrb[0].mxu0
    %v363 = vpop.f32.mrb[0].mxu0
    %v364 = vpop.f32.mrb[0].mxu0
    %365 = vdwg.mxu0
    %366 = vmax.xlane.f32.xlu0 %v361
    %v367 = vpop.xlane.xlu0 %366
    %v368 = vsub.f32 %v361, %v367
    %v369 = vmul.f32 %v368, 1.442695
    %v370 = vpow.pop %v369
    %371 = vadd.xlane.f32.xlu0 %v370
    %v372 = vpop.xlane.xlu0 %371
    %v373 = vlog2.pop %v372
    %v374 = vmul.f32 %v373, 0.6931472
    %v375 = vadd.f32 %v367, %v374
    %v376 = vsub.f32 %v361, %v375
    %377 = vst [vmem:[#allocation2] sm:$0xff] %v376
    // Predicated region
    $region30: #{mlp_forward.1} parent=1 // pred_check
      _
    $region31: #{mlp_forward.1} parent=1 // pred_check_branch
      %379 = sbr.rel (0) target = $region33
    $region32: #{mlp_forward.1} parent=1 // pred_region
      %s381 = ssub.s32 128, 128
      %382 = vsyncadd [#allocation3], %s381
      %s384 = sshll.u32 [#allocation2], 4
      %s385 = int_to_ptr.vmem [resolvable:$true] %s384
      %387 = dma.vmem_to_hbm [thread:$0]  %s385, 128, %s7, [#allocation3]
    $region33: #{mlp_forward.1} parent=1 // pred_fallthru
      _
    // Predicated region
    $region34: #{mlp_forward.1} parent=1 // pred_check
      _
    $region35: #{mlp_forward.1} parent=1 // pred_check_branch
      %389 = sbr.rel (0) target = $region37
    $region36: #{mlp_forward.1} parent=1 // pred_region
      %390 = dma.done [#allocation3], 128
    $region37: #{mlp_forward.1} parent=1 // pred_fallthru
      _
    %391 = vsyncpa [#allocation3], 1

// kernel: mlp_forward.1
$region0: #{mlp_forward.1}
  #allocation0 [shape = 'u32[]', space=smem, size = 0x4, offset = 0x4, fixed_abs, tag = 'smem constant byte address 0x4 - core index']
  #allocation1 [shape = 'u32[144,128]{1,0:T(1,128)}', space=vmem, size = 0x12000, scoped, tag = 'internal scratch']
  %s0 = inlined_call_operand.vmem [shape: bf16[8,128], index: 0, kind: input, shape index: {}]
  %s1 = inlined_call_operand.vmem [shape: bf16[128,128], index: 1, kind: input, shape index: {}]
  %s2 = inlined_call_operand.vmem [shape: f32[1,128], index: 2, kind: input, shape index: {}]
  %s3 = inlined_call_operand.vmem [shape: bf16[128,128], index: 3, kind: input, shape index: {}]
  %s4 = inlined_call_operand.vmem [shape: f32[1,128], index: 4, kind: input, shape index: {}]
  %s5 = inlined_call_operand.vmem [shape: bf16[128,128], index: 5, kind: input, shape index: {}]
  %s6 = inlined_call_operand.vmem [shape: f32[1,128], index: 6, kind: input, shape index: {}]
  %s7 = inlined_call_operand.hbm [shape: f32[8,128], index: 7, kind: output, shape index: {}]
  %s8 = sld [smem:[#allocation0]]
  $region38: #{mlp_forward.1} parent=0
    _
  %s10 = ssub.s32 1, %s8
  %s11 = scalar_select 0, %s10, %s8
  $region1: #{mlp_forward.1} parent=0
    #allocation2 [shape = 'u8[4096]{0}', space=vmem, size = 0x1000, scoped, tag = 'output window, operand 0, single buffered']
    #allocation3 [shape = 's32[1]{0}', space=sflag, size = 0x4, scoped, tag = 'scoped memory for mlp_forward.1']
    %12 = vsyncpa [#allocation3], 0
    // Predicated region
    $region2: #{mlp_forward.1} parent=1 // pred_check
      _
    $region3: #{mlp_forward.1} parent=1 // pred_check_branch
      %14 = sbr.rel (0) target = $region5
    $region4: #{mlp_forward.1} parent=1 // pred_region
      _
    $region5: #{mlp_forward.1} parent=1 // pred_fallthru
      _
    // Predicated region
    $region6: #{mlp_forward.1} parent=1 // pred_check
      _
    $region7: #{mlp_forward.1} parent=1 // pred_check_branch
      %16 = sbr.rel (0) target = $region9
    $region8: #{mlp_forward.1} parent=1 // pred_region
      _
    $region9: #{mlp_forward.1} parent=1 // pred_fallthru
      _
    // Predicated region
    $region10: #{mlp_forward.1} parent=1 // pred_check
      _
    $region11: #{mlp_forward.1} parent=1 // pred_check_branch
      %18 = sbr.rel (0) target = $region13
    $region12: #{mlp_forward.1} parent=1 // pred_region
      _
    $region13: #{mlp_forward.1} parent=1 // pred_fallthru
      _
    // Predicated region
    $region14: #{mlp_forward.1} parent=1 // pred_check
      _
    $region15: #{mlp_forward.1} parent=1 // pred_check_branch
      %20 = sbr.rel (0) target = $region17
    $region16: #{mlp_forward.1} parent=1 // pred_region
      _
    $region17: #{mlp_forward.1} parent=1 // pred_fallthru
      _
    // Predicated region
    $region18: #{mlp_forward.1} parent=1 // pred_check
      _
    $region19: #{mlp_forward.1} parent=1 // pred_check_branch
      %22 = sbr.rel (0) target = $region21
    $region20: #{mlp_forward.1} parent=1 // pred_region
      _
    $region21: #{mlp_forward.1} parent=1 // pred_fallthru
      _
    // Predicated region
    $region22: #{mlp_forward.1} parent=1 // pred_check
      _
    $region23: #{mlp_forward.1} parent=1 // pred_check_branch
      %24 = sbr.rel (0) target = $region25
    $region24: #{mlp_forward.1} parent=1 // pred_region
      _
    $region25: #{mlp_forward.1} parent=1 // pred_fallthru
      _
    // Predicated region
    $region26: #{mlp_forward.1} parent=1 // pred_check
      _
    $region27: #{mlp_forward.1} parent=1 // pred_check_branch
      %26 = sbr.rel (0) target = $region29
    $region28: #{mlp_forward.1} parent=1 // pred_region
      _
    $region29: #{mlp_forward.1} parent=1 // pred_fallthru
      _
    %v28 = vld [vmem:[%s0] sm:$0xf]
    %v29 = vld [vmem:[%s1] sm:$0xf]
    %v30 = vld [vmem:[%s1 + $0x4] sm:$0xf]
    %v31 = vld [vmem:[%s1 + $0x8] sm:$0xf]
    %v32 = vld [vmem:[%s1 + $0xc] sm:$0xf]
    %v33 = vld [vmem:[%s1 + $0x10] sm:$0xf]
    %v34 = vld [vmem:[%s1 + $0x14] sm:$0xf]
    %v35 = vld [vmem:[%s1 + $0x18] sm:$0xf]
    %v36 = vld [vmem:[%s1 + $0x1c] sm:$0xf]
    %v37 = vld [vmem:[%s1 + $0x20] sm:$0xf]
    %v38 = vld [vmem:[%s1 + $0x24] sm:$0xf]
    %v39 = vld [vmem:[%s1 + $0x28] sm:$0xf]
    %v40 = vld [vmem:[%s1 + $0x2c] sm:$0xf]
    %v41 = vld [vmem:[%s1 + $0x30] sm:$0xf]
    %v42 = vld [vmem:[%s1 + $0x34] sm:$0xf]
    %v43 = vld [vmem:[%s1 + $0x38] sm:$0xf]
    %v44 = vld [vmem:[%s1 + $0x3c] sm:$0xf]
    %v45 = vld [vmem:[%s2] sm:$0x1]
    %v47 = vlaneseq
    %v48 = vshrl.u32 %v47, 7
    %v49 = vsub.s32 0, %v48
    %v50 = vrot.slane %v45, %v49
    %v68 = vunpack.c.l.b16 %v29
    %v69 = vunpack.c.l.b16 %v30
    %v70 = vunpack.c.l.b16 %v31
    %v71 = vunpack.c.l.b16 %v32
    %v72 = vunpack.c.l.b16 %v33
    %v73 = vunpack.c.l.b16 %v34
    %v74 = vunpack.c.l.b16 %v35
    %v75 = vunpack.c.l.b16 %v36
    %v76 = vunpack.c.l.b16 %v37
    %v77 = vunpack.c.l.b16 %v38
    %v78 = vunpack.c.l.b16 %v39
    %v79 = vunpack.c.l.b16 %v40
    %v80 = vunpack.c.l.b16 %v41
    %v81 = vunpack.c.l.b16 %v42
    %v82 = vunpack.c.l.b16 %v43
    %v83 = vunpack.c.l.b16 %v44
    %v84 = vpack.c.b16 %v69, %v68
    %v85 = vpack.c.b16 %v71, %v70
    %v86 = vpack.c.b16 %v73, %v72
    %v87 = vpack.c.b16 %v75, %v74
    %v88 = vpack.c.b16 %v77, %v76
    %v89 = vpack.c.b16 %v79, %v78
    %v90 = vpack.c.b16 %v81, %v80
    %v91 = vpack.c.b16 %v83, %v82
    %100 = vmatprep.subr.bf16.mxu0 0
    %101 = vmatpush1.bf16.msra.mxu0 %v84
    %102 = vmatprep.subr.bf16.mxu0 0
    %103 = vmatpush1.bf16.msra.mxu0 %v85
    %104 = vmatprep.subr.bf16.mxu0 0
    %105 = vmatpush1.bf16.msra.mxu0 %v86
    %106 = vmatprep.subr.bf16.mxu0 0
    %107 = vmatpush1.bf16.msra.mxu0 %v87
    %108 = vmatprep.subr.bf16.mxu0 0
    %109 = vmatpush1.bf16.msra.mxu0 %v88
    %110 = vmatprep.subr.bf16.mxu0 0
    %111 = vmatpush1.bf16.msra.mxu0 %v89
    %112 = vmatprep.subr.bf16.mxu0 0
    %113 = vmatpush1.bf16.msra.mxu0 %v90
    %114 = vmatprep.subr.bf16.mxu0 0
    %115 = vmatpush1.bf16.msra.mxu0 %v91
    %116 = vmatprep.subr.bf16.mxu0 0
    %117 = vmatpush1.bf16.msra.mxu0 0
    %118 = vmatprep.subr.bf16.mxu0 0
    %119 = vmatpush1.bf16.msra.mxu0 0
    %120 = vmatprep.subr.bf16.mxu0 0
    %121 = vmatpush1.bf16.msra.mxu0 0
    %122 = vmatprep.subr.bf16.mxu0 0
    %123 = vmatpush1.bf16.msra.mxu0 0
    %124 = vmatprep.subr.bf16.mxu0 0
    %125 = vmatpush1.bf16.msra.mxu0 0
    %126 = vmatprep.subr.bf16.mxu0 0
    %127 = vmatpush1.bf16.msra.mxu0 0
    %128 = vmatprep.subr.bf16.mxu0 0
    %129 = vmatpush1.bf16.msra.mxu0 0
    %130 = vmatprep.subr.bf16.mxu0 0
    %131 = vmatpush1.bf16.msra.mxu0 0
    %132 = vmatprep.mubr.bf16.mxu0 0
    %133 = vmatmul.mubr.bf16.gmra.mrb[0].mxu0 %v28
    %v134 = vpop.f32.mrb[0].mxu0
    %v135 = vadd.f32 %v50, %v134
    %v136 = vpop.f32.mrb[0].mxu0
    %v137 = vpop.f32.mrb[0].mxu0
    %v138 = vpop.f32.mrb[0].mxu0
    %139 = vdwg.mxu0
    %v140 = vmax.f32 %v135, 0.0
    %v141 = vpack.c.bf16 %v140, %v140
    %v142 = vld [vmem:[%s3] sm:$0xf]
    %v143 = vld [vmem:[%s3 + $0x4] sm:$0xf]
    %v144 = vld [vmem:[%s3 + $0x8] sm:$0xf]
    %v145 = vld [vmem:[%s3 + $0xc] sm:$0xf]
    %v146 = vld [vmem:[%s3 + $0x10] sm:$0xf]
    %v147 = vld [vmem:[%s3 + $0x14] sm:$0xf]
    %v148 = vld [vmem:[%s3 + $0x18] sm:$0xf]
    %v149 = vld [vmem:[%s3 + $0x1c] sm:$0xf]
    %v150 = vld [vmem:[%s3 + $0x20] sm:$0xf]
    %v151 = vld [vmem:[%s3 + $0x24] sm:$0xf]
    %v152 = vld [vmem:[%s3 + $0x28] sm:$0xf]
    %v153 = vld [vmem:[%s3 + $0x2c] sm:$0xf]
    %v154 = vld [vmem:[%s3 + $0x30] sm:$0xf]
    %v155 = vld [vmem:[%s3 + $0x34] sm:$0xf]
    %v156 = vld [vmem:[%s3 + $0x38] sm:$0xf]
    %v157 = vld [vmem:[%s3 + $0x3c] sm:$0xf]
    %v158 = vld [vmem:[%s4] sm:$0x1]
    %v160 = vlaneseq
    %v161 = vshrl.u32 %v160, 7
    %v162 = vsub.s32 0, %v161
    %v163 = vrot.slane %v158, %v162
    %v181 = vunpack.c.l.b16 %v142
    %v182 = vunpack.c.l.b16 %v143
    %v183 = vunpack.c.l.b16 %v144
    %v184 = vunpack.c.l.b16 %v145
    %v185 = vunpack.c.l.b16 %v146
    %v186 = vunpack.c.l.b16 %v147
    %v187 = vunpack.c.l.b16 %v148
    %v188 = vunpack.c.l.b16 %v149
    %v189 = vunpack.c.l.b16 %v150
    %v190 = vunpack.c.l.b16 %v151
    %v191 = vunpack.c.l.b16 %v152
    %v192 = vunpack.c.l.b16 %v153
    %v193 = vunpack.c.l.b16 %v154
    %v194 = vunpack.c.l.b16 %v155
    %v195 = vunpack.c.l.b16 %v156
    %v196 = vunpack.c.l.b16 %v157
    %v197 = vpack.c.b16 %v182, %v181
    %v198 = vpack.c.b16 %v184, %v183
    %v199 = vpack.c.b16 %v186, %v185
    %v200 = vpack.c.b16 %v188, %v187
    %v201 = vpack.c.b16 %v190, %v189
    %v202 = vpack.c.b16 %v192, %v191
    %v203 = vpack.c.b16 %v194, %v193
    %v204 = vpack.c.b16 %v196, %v195
    %213 = vmatprep.subr.bf16.mxu0 0
    %214 = vmatpush1.bf16.msra.mxu0 %v197
    %215 = vmatprep.subr.bf16.mxu0 0
    %216 = vmatpush1.bf16.msra.mxu0 %v198
    %217 = vmatprep.subr.bf16.mxu0 0
    %218 = vmatpush1.bf16.msra.mxu0 %v199
    %219 = vmatprep.subr.bf16.mxu0 0
    %220 = vmatpush1.bf16.msra.mxu0 %v200
    %221 = vmatprep.subr.bf16.mxu0 0
    %222 = vmatpush1.bf16.msra.mxu0 %v201
    %223 = vmatprep.subr.bf16.mxu0 0
    %224 = vmatpush1.bf16.msra.mxu0 %v202
    %225 = vmatprep.subr.bf16.mxu0 0
    %226 = vmatpush1.bf16.msra.mxu0 %v203
    %227 = vmatprep.subr.bf16.mxu0 0
    %228 = vmatpush1.bf16.msra.mxu0 %v204
    %229 = vmatprep.subr.bf16.mxu0 0
    %230 = vmatpush1.bf16.msra.mxu0 0
    %231 = vmatprep.subr.bf16.mxu0 0
    %232 = vmatpush1.bf16.msra.mxu0 0
    %233 = vmatprep.subr.bf16.mxu0 0
    %234 = vmatpush1.bf16.msra.mxu0 0
    %235 = vmatprep.subr.bf16.mxu0 0
    %236 = vmatpush1.bf16.msra.mxu0 0
    %237 = vmatprep.subr.bf16.mxu0 0
    %238 = vmatpush1.bf16.msra.mxu0 0
    %239 = vmatprep.subr.bf16.mxu0 0
    %240 = vmatpush1.bf16.msra.mxu0 0
    %241 = vmatprep.subr.bf16.mxu0 0
    %242 = vmatpush1.bf16.msra.mxu0 0
    %243 = vmatprep.subr.bf16.mxu0 0
    %244 = vmatpush1.bf16.msra.mxu0 0
    %245 = vmatprep.mubr.bf16.mxu0 0
    %246 = vmatmul.mubr.bf16.gmra.mrb[0].mxu0 %v141
    %v247 = vpop.f32.mrb[0].mxu0
    %v248 = vadd.f32 %v163, %v247
    %v249 = vpop.f32.mrb[0].mxu0
    %v250 = vpop.f32.mrb[0].mxu0
    %v251 = vpop.f32.mrb[0].mxu0
    %252 = vdwg.mxu0
    %v253 = vmax.f32 %v248, 0.0
    %v254 = vpack.c.bf16 %v253, %v253
    %v255 = vld [vmem:[%s5] sm:$0xf]
    %v256 = vld [vmem:[%s5 + $0x4] sm:$0xf]
    %v257 = vld [vmem:[%s5 + $0x8] sm:$0xf]
    %v258 = vld [vmem:[%s5 + $0xc] sm:$0xf]
    %v259 = vld [vmem:[%s5 + $0x10] sm:$0xf]
    %v260 = vld [vmem:[%s5 + $0x14] sm:$0xf]
    %v261 = vld [vmem:[%s5 + $0x18] sm:$0xf]
    %v262 = vld [vmem:[%s5 + $0x1c] sm:$0xf]
    %v263 = vld [vmem:[%s5 + $0x20] sm:$0xf]
    %v264 = vld [vmem:[%s5 + $0x24] sm:$0xf]
    %v265 = vld [vmem:[%s5 + $0x28] sm:$0xf]
    %v266 = vld [vmem:[%s5 + $0x2c] sm:$0xf]
    %v267 = vld [vmem:[%s5 + $0x30] sm:$0xf]
    %v268 = vld [vmem:[%s5 + $0x34] sm:$0xf]
    %v269 = vld [vmem:[%s5 + $0x38] sm:$0xf]
    %v270 = vld [vmem:[%s5 + $0x3c] sm:$0xf]
    %v271 = vld [vmem:[%s6] sm:$0x1]
    %v273 = vlaneseq
    %v274 = vshrl.u32 %v273, 7
    %v275 = vsub.s32 0, %v274
    %v276 = vrot.slane %v271, %v275
    %v294 = vunpack.c.l.b16 %v255
    %v295 = vunpack.c.l.b16 %v256
    %v296 = vunpack.c.l.b16 %v257
    %v297 = vunpack.c.l.b16 %v258
    %v298 = vunpack.c.l.b16 %v259
    %v299 = vunpack.c.l.b16 %v260
    %v300 = vunpack.c.l.b16 %v261
    %v301 = vunpack.c.l.b16 %v262
    %v302 = vunpack.c.l.b16 %v263
    %v303 = vunpack.c.l.b16 %v264
    %v304 = vunpack.c.l.b16 %v265
    %v305 = vunpack.c.l.b16 %v266
    %v306 = vunpack.c.l.b16 %v267
    %v307 = vunpack.c.l.b16 %v268
    %v308 = vunpack.c.l.b16 %v269
    %v309 = vunpack.c.l.b16 %v270
    %v310 = vpack.c.b16 %v295, %v294
    %v311 = vpack.c.b16 %v297, %v296
    %v312 = vpack.c.b16 %v299, %v298
    %v313 = vpack.c.b16 %v301, %v300
    %v314 = vpack.c.b16 %v303, %v302
    %v315 = vpack.c.b16 %v305, %v304
    %v316 = vpack.c.b16 %v307, %v306
    %v317 = vpack.c.b16 %v309, %v308
    %326 = vmatprep.subr.bf16.mxu0 0
    %327 = vmatpush1.bf16.msra.mxu0 %v310
    %328 = vmatprep.subr.bf16.mxu0 0
    %329 = vmatpush1.bf16.msra.mxu0 %v311
    %330 = vmatprep.subr.bf16.mxu0 0
    %331 = vmatpush1.bf16.msra.mxu0 %v312
    %332 = vmatprep.subr.bf16.mxu0 0
    %333 = vmatpush1.bf16.msra.mxu0 %v313
    %334 = vmatprep.subr.bf16.mxu0 0
    %335 = vmatpush1.bf16.msra.mxu0 %v314
    %336 = vmatprep.subr.bf16.mxu0 0
    %337 = vmatpush1.bf16.msra.mxu0 %v315
    %338 = vmatprep.subr.bf16.mxu0 0
    %339 = vmatpush1.bf16.msra.mxu0 %v316
    %340 = vmatprep.subr.bf16.mxu0 0
    %341 = vmatpush1.bf16.msra.mxu0 %v317
    %342 = vmatprep.subr.bf16.mxu0 0
    %343 = vmatpush1.bf16.msra.mxu0 0
    %344 = vmatprep.subr.bf16.mxu0 0
    %345 = vmatpush1.bf16.msra.mxu0 0
    %346 = vmatprep.subr.bf16.mxu0 0
    %347 = vmatpush1.bf16.msra.mxu0 0
    %348 = vmatprep.subr.bf16.mxu0 0
    %349 = vmatpush1.bf16.msra.mxu0 0
    %350 = vmatprep.subr.bf16.mxu0 0
    %351 = vmatpush1.bf16.msra.mxu0 0
    %352 = vmatprep.subr.bf16.mxu0 0
    %353 = vmatpush1.bf16.msra.mxu0 0
    %354 = vmatprep.subr.bf16.mxu0 0
    %355 = vmatpush1.bf16.msra.mxu0 0
    %356 = vmatprep.subr.bf16.mxu0 0
    %357 = vmatpush1.bf16.msra.mxu0 0
    %358 = vmatprep.mubr.bf16.mxu0 0
    %359 = vmatmul.mubr.bf16.gmra.mrb[0].mxu0 %v254
    %v360 = vpop.f32.mrb[0].mxu0
    %v361 = vadd.f32 %v276, %v360
    %v362 = vpop.f32.mrb[0].mxu0
    %v363 = vpop.f32.mrb[0].mxu0
    %v364 = vpop.f32.mrb[0].mxu0
    %365 = vdwg.mxu0
    %366 = vmax.xlane.f32.xlu0 %v361
    %v367 = vpop.xlane.xlu0 %366
    %v368 = vsub.f32 %v361, %v367
    %v369 = vmul.f32 %v368, 1.442695
    %v370 = vpow.pop %v369
    %371 = vadd.xlane.f32.xlu0 %v370
    %v372 = vpop.xlane.xlu0 %371
    %v373 = vlog2.pop %v372
    %v374 = vmul.f32 %v373, 0.6931472
    %v375 = vadd.f32 %v367, %v374
    %v376 = vsub.f32 %v361, %v375
    %377 = vst [vmem:[#allocation2] sm:$0xff] %v376
    // Predicated region
    $region30: #{mlp_forward.1} parent=1 // pred_check
      _
    $region31: #{mlp_forward.1} parent=1 // pred_check_branch
      %379 = sbr.rel (0) target = $region33
    $region32: #{mlp_forward.1} parent=1 // pred_region
      %s381 = ssub.s32 128, 128
      %382 = vsyncadd [#allocation3], %s381
      %s384 = sshll.u32 [#allocation2], 4
      %s385 = int_to_ptr.vmem [resolvable:$true] %s384
      %387 = dma.vmem_to_hbm [thread:$0]  %s385, 128, %s7, [#allocation3]
    $region33: #{mlp_forward.1} parent=1 // pred_fallthru
      _
    // Predicated region
    $region34: #{mlp_forward.1} parent=1 // pred_check
      _
    $region35: #{mlp_forward.1} parent=1 // pred_check_branch
      %389 = sbr.rel (0) target = $region37
    $region36: #{mlp_forward.1} parent=1 // pred_region
      %390 = dma.done [#allocation3], 128
    $region37: #{mlp_forward.1} parent=1 // pred_fallthru
      _
    %391 = vsyncpa [#allocation3], 1

</llo_original>
